<compile_context>
chip_gen: v7x
topology: tpu7x:2x2x1
jax: 0.10.0
libtpu: 0.0.40
codegen_flags: <defaults>
</compile_context>

<pallas_src>
import jax
import jax.numpy as jnp
from jax.experimental import pallas as pl
from jax.experimental.pallas import tpu as pltpu


def patch_embed_kernel(patches_ref, w_ref, pos_ref, out_ref):
    # patches_ref: (rows, K_pad) bf16 -- rows = c*(N+1); row 0 of each image is a
    #              zero K-row so the cls position is produced by the matmul.
    # w_ref:       (K_pad, tn) bf16   -- grid-invariant when tn == E (DMA'd once).
    # pos_ref:     (rows, tn)  f32    -- bias/cls-folded positional table,
    #              pre-replicated over the c images of a tile (grid-invariant).
    # out_ref:     (rows, tn)         -- flattened (B*(N+1), E) output tile.
    proj = jnp.dot(patches_ref[...], w_ref[...],
                   preferred_element_type=jnp.float32)
    out_ref[...] = (proj + pos_ref[...]).astype(out_ref.dtype)


def _round_up(v, m):
    return (v + m - 1) // m * m


def _images_per_tile(batch, rows_per_image, target_rows=1024):
    """Images per M-tile.

    Prefers the largest batch-divisor c with (c * rows_per_image) % 8 == 0 whose
    tile stays <= target_rows while leaving >= 2 grid steps (v7x megacore);
    falls back to the smallest aligned divisor if even that exceeds target_rows,
    and to the full batch (full-M block is always legal) only when no divisor is
    sublane-aligned (e.g. tiny toy batches).
    """
    valid = [c for c in range(1, batch + 1)
             if batch % c == 0 and (c * rows_per_image) % 8 == 0]
    if not valid:
        return batch
    fitting = [c for c in valid if c * rows_per_image <= target_rows]
    if fitting:
        multi_step = [c for c in fitting if batch // c >= 2]
        return max(multi_step) if multi_step else max(fitting)
    return min(valid)


def _choose_tn(emb, k_pad, rows_tile):
    """E-tile width.  Prefer tn = E (j axis disappears -> weight/pos fetched
    once); only tile E when the resident tables are large, preferring multiples
    of 256 (v6e/v7x MXU width)."""
    resident = 2 * (k_pad * emb * 2 + rows_tile * emb * 4)  # dbl-buffered w + pos
    if resident <= 12 * 1024 * 1024:
        return emb
    for tn in (512, 256, 128):
        if emb % tn == 0:
            return tn
    return emb


def patch_embedding(x, conv_w, conv_b, cls_token, positions, patch_size,
                    out_dtype=jnp.bfloat16):
    """x: (B, C, H, W) float32 (NCHW, like PyTorch). Returns (B, N+1, E)."""
    B, C, H, W = x.shape
    P = patch_size
    E = conv_w.shape[0]
    if H % P != 0 or W % P != 0:
        raise ValueError("image size must be divisible by patch_size")
    nh, nw = H // P, W // P
    N = nh * nw
    K = C * P * P
    K_pad = _round_up(K, 128)
    rows_per_image = N + 1
    out_dtype = jnp.dtype(out_dtype)

    # im2col fused with the bf16 downcast, the cls zero-row prepend and the K
    # zero-pad (single XLA fusion: read x once, write half-width patches once).
    # K-order is (C, P, P), matching the conv weight.
    patches = x.astype(jnp.bfloat16).reshape(B, C, nh, P, nw, P)
    patches = patches.transpose(0, 2, 4, 1, 3, 5).reshape(B, N, K)
    patches = jnp.pad(patches, ((0, 0), (1, 0), (0, K_pad - K)))
    patches = patches.reshape(B * rows_per_image, K_pad)
    # TODO(synk): move patch extraction in-kernel (DMA NCHW row-slabs from HBM
    # via memory_space=pl.ANY + make_async_copy, rearrange in VMEM) to remove
    # this HBM im2col round trip (matters most on v5e/v6e).

    # One-time weight-side precompute (constants, not per-call activations):
    #   conv weight (E, C, P, P) -> (K_pad, E) bf16 matmul weight (zero-padded K)
    #   positional table: row 0 = cls_token + positions[0] (matmul row is zero),
    #                     rows 1..N = positions[1:] + conv bias.
    w_mat = jnp.pad(conv_w.reshape(E, K).T.astype(jnp.bfloat16),
                    ((0, K_pad - K), (0, 0)))                            # (K_pad, E)
    pos_tab = jnp.concatenate(
        [cls_token.reshape(1, E) + positions[0:1, :],
         positions[1:, :] + conv_b[None, :]], axis=0).astype(jnp.float32)  # (N+1, E)

    c = _images_per_tile(B, rows_per_image)       # images per grid step along M
    rows_tile = c * rows_per_image
    tn = _choose_tn(E, K_pad, rows_tile)          # lane-dense E tile (prefer E)
    grid = (B // c, E // tn)

    # Replicate the table over the c images of a tile so the kernel epilogue is a
    # plain aligned f32 add (no in-kernel tile / reshape relayout).  Grid-invariant
    # block -> DMA'd once.
    pos_rep = jnp.tile(pos_tab, (c, 1))                                  # (rows_tile, E)

    # VMEM budget from the actual double-buffered working set (v7x has 64 MiB).
    vmem_bytes = 2 * (rows_tile * K_pad * 2            # patches tile (bf16)
                      + K_pad * tn * 2                 # weight (bf16)
                      + rows_tile * tn * 4             # pos table (f32)
                      + rows_tile * tn * out_dtype.itemsize)   # output tile
    vmem_limit = int(min(max(vmem_bytes + 4 * 1024 * 1024, 8 * 1024 * 1024),
                         64 * 1024 * 1024))

    out_flat = pl.pallas_call(
        patch_embed_kernel,
        out_shape=jax.ShapeDtypeStruct((B * rows_per_image, E), out_dtype),
        grid_spec=pltpu.PrefetchScalarGridSpec(
            num_scalar_prefetch=0,
            grid=grid,
            in_specs=[
                pl.BlockSpec((rows_tile, K_pad), lambda i, j: (i, 0)),  # patches M-tile
                pl.BlockSpec((K_pad, tn), lambda i, j: (0, j)),         # weight
                pl.BlockSpec((rows_tile, tn), lambda i, j: (0, j)),     # pos table
            ],
            out_specs=pl.BlockSpec((rows_tile, tn), lambda i, j: (i, j)),
        ),
        compiler_params=pltpu.CompilerParams(
            dimension_semantics=("parallel", "parallel"),
            vmem_limit_bytes=vmem_limit,
        ),
    )(patches, w_mat, pos_rep)
    return out_flat.reshape(B, rows_per_image, E)


if __name__ == "__main__":
    # Small config consistent with the module:
    # in_channels=4, patch_size=4, emb_size=32, img_size=16 -> N=16 patches, seq=17
    B, C, IMG, P, E = 2, 4, 16, 4, 32
    N = (IMG // P) ** 2

    key = jax.random.PRNGKey(0)
    kx, kw, kb, kc, kp = jax.random.split(key, 5)

    x = jax.random.normal(kx, (B, C, IMG, IMG), dtype=jnp.float32)
    conv_w = jax.random.normal(kw, (E, C, P, P), dtype=jnp.float32) * 0.02
    conv_b = jax.random.normal(kb, (E,), dtype=jnp.float32) * 0.02
    cls_token = jax.random.normal(kc, (1, 1, E), dtype=jnp.float32)
    positions = jax.random.normal(kp, (N + 1, E), dtype=jnp.float32)

    # f32-output run (tight structural check) and default bf16-output run.
    out_f32 = jax.block_until_ready(
        patch_embedding(x, conv_w, conv_b, cls_token, positions, P,
                        out_dtype=jnp.float32))
    out_bf16 = jax.block_until_ready(
        patch_embedding(x, conv_w, conv_b, cls_token, positions, P))

    # Reference in plain JAX, using the same bf16 input quantization as the kernel
    # (f32 accumulation), so only the kernel structure is being checked.
    patches_ref = x.astype(jnp.bfloat16).astype(jnp.float32)
    patches_ref = patches_ref.reshape(B, C, IMG // P, P, IMG // P, P)
    patches_ref = patches_ref.transpose(0, 2, 4, 1, 3, 5).reshape(B, N, C * P * P)
    w_ref = conv_w.reshape(E, -1).T.astype(jnp.bfloat16).astype(jnp.float32)
    proj_ref = patches_ref @ w_ref + conv_b
    ref = jnp.concatenate(
        [jnp.broadcast_to(cls_token.reshape(1, 1, E), (B, 1, E)), proj_ref], axis=1
    ) + positions

    assert out_f32.shape == (B, N + 1, E)
    assert out_bf16.shape == (B, N + 1, E)
    assert jnp.allclose(out_f32, ref, atol=1e-3, rtol=1e-3), \
        float(jnp.max(jnp.abs(out_f32 - ref)))
    assert jnp.allclose(out_bf16.astype(jnp.float32), ref, atol=5e-2, rtol=5e-2), \
        float(jnp.max(jnp.abs(out_bf16.astype(jnp.float32) - ref)))
    print("KERNEL_OK")
</pallas_src>

<mosaic_0001>
module attributes {stable_mosaic.version = 11 : i64} {
  func.func @patch_embed_kernel(%arg0: i32, %arg1: i32, %arg2: memref<34x128xbf16, #tpu.memory_space<vmem>>, %arg3: memref<128x32xbf16, #tpu.memory_space<vmem>>, %arg4: memref<34x32xf32, #tpu.memory_space<vmem>>, %arg5: memref<34x32xf32, #tpu.memory_space<vmem>>) attributes {dimension_semantics = [#tpu.dimension_semantics<parallel>, #tpu.dimension_semantics<parallel>], iteration_bounds = array<i64: 1, 1>, scalar_prefetch = 0 : i64, scratch_operands = 0 : i64, tpu.core_type = #tpu.core_type<tc>, window_params = [{transform_indices = @transform_0, window_bounds = array<i64: 34, 128>}, {transform_indices = @transform_1, window_bounds = array<i64: 128, 32>}, {transform_indices = @transform_2, window_bounds = array<i64: 34, 32>}, {transform_indices = @transform_3, window_bounds = array<i64: 34, 32>}]} {
    %c0 = arith.constant 0 : index
    %c0_0 = arith.constant 0 : index
    %0 = vector.load %arg2[%c0, %c0_0] : memref<34x128xbf16, #tpu.memory_space<vmem>>, vector<34x128xbf16>
    %c0_1 = arith.constant 0 : index
    %c0_2 = arith.constant 0 : index
    %1 = vector.load %arg3[%c0_1, %c0_2] : memref<128x32xbf16, #tpu.memory_space<vmem>>, vector<128x32xbf16>
    %cst = arith.constant dense<0.000000e+00> : vector<34x32xf32>
    %2 = tpu.matmul %0, %1, %cst {dimension_numbers = #tpu.dot_dimension_numbers<[1], [0], [0], [1], [0, 0, 1, 1], [], []>} : vector<34x128xbf16>, vector<128x32xbf16>, vector<34x32xf32> -> vector<34x32xf32>
    %c0_3 = arith.constant 0 : index
    %c0_4 = arith.constant 0 : index
    %3 = vector.load %arg4[%c0_3, %c0_4] : memref<34x32xf32, #tpu.memory_space<vmem>>, vector<34x32xf32>
    %4 = arith.addf %2, %3 : vector<34x32xf32>
    %c0_5 = arith.constant 0 : index
    %c0_6 = arith.constant 0 : index
    %5 = vector.load %arg5[%c0_5, %c0_6] : memref<34x32xf32, #tpu.memory_space<vmem>>, vector<34x32xf32>
    tpu.vector_store %arg5[%c0_5, %c0_6], %4 {strides = array<i32>} : memref<34x32xf32, #tpu.memory_space<vmem>>, vector<34x32xf32>,
    return
  }
  func.func @transform_0(%arg0: i32, %arg1: i32) -> (i32, i32) {
    %c0_i32 = arith.constant 0 : i32
    %c0_i32_0 = arith.constant 0 : i32
    return %arg0, %c0_i32 : i32, i32
  }
  func.func @transform_1(%arg0: i32, %arg1: i32) -> (i32, i32) {
    %c0_i32 = arith.constant 0 : i32
    %c0_i32_0 = arith.constant 0 : i32
    return %c0_i32, %arg1 : i32, i32
  }
  func.func @transform_2(%arg0: i32, %arg1: i32) -> (i32, i32) {
    %c0_i32 = arith.constant 0 : i32
    %c0_i32_0 = arith.constant 0 : i32
    return %c0_i32, %arg1 : i32, i32
  }
  func.func @transform_3(%arg0: i32, %arg1: i32) -> (i32, i32) {
    %c0_i32 = arith.constant 0 : i32
    return %arg0, %arg1 : i32, i32
  }
}

</mosaic_0001>

<llo_original>
// kernel: tpu_custom_call.1
$region0: #{tpu_custom_call.1}
  #allocation0 [shape = 'u32[]', space=smem, size = 0x4, offset = 0x4, fixed_abs, tag = 'smem constant byte address 0x4 - core index']
  #allocation1 [shape = 'u32[144,128]{1,0:T(1,128)}', space=vmem, size = 0x12000, scoped, tag = 'internal scratch']
  %s0 = inlined_call_operand.vmem [shape: bf16[34,128], index: 0, kind: input, shape index: {}]
  %s1 = inlined_call_operand.vmem [shape: bf16[128,32], index: 1, kind: input, shape index: {}]
  %s2 = inlined_call_operand.vmem [shape: f32[34,32], index: 2, kind: input, shape index: {}]
  %s3 = inlined_call_operand.vmem [shape: f32[34,32], index: 3, kind: output, shape index: {}]
  %s4 = sld [smem:[#allocation0]]
  $region22: #{tpu_custom_call.1} parent=0
    _
  %s6 = ssub.s32 1, %s4
  %s7 = scalar_select 0, %s6, %s4
  // Predicated region
  $region2: #{tpu_custom_call.1} parent=0 // pred_check
    _
  $region3: #{tpu_custom_call.1} parent=0 // pred_check_branch
    %9 = sbr.rel (0) target = $region5
  $region4: #{tpu_custom_call.1} parent=0 // pred_region
    _
  $region5: #{tpu_custom_call.1} parent=0 // pred_fallthru
    _
  // Predicated region
  $region6: #{tpu_custom_call.1} parent=0 // pred_check
    _
  $region7: #{tpu_custom_call.1} parent=0 // pred_check_branch
    %11 = sbr.rel (0) target = $region9
  $region8: #{tpu_custom_call.1} parent=0 // pred_region
    _
  $region9: #{tpu_custom_call.1} parent=0 // pred_fallthru
    _
  // Predicated region
  $region10: #{tpu_custom_call.1} parent=0 // pred_check
    _
  $region11: #{tpu_custom_call.1} parent=0 // pred_check_branch
    %13 = sbr.rel (0) target = $region13
  $region12: #{tpu_custom_call.1} parent=0 // pred_region
    _
  $region13: #{tpu_custom_call.1} parent=0 // pred_fallthru
    _
  %v15 = vld [vmem:[%s0] sm:$0xf]
  %v16 = vld [vmem:[%s0 + $0x4] sm:$0xf]
  %v17 = vld [vmem:[%s0 + $0x8] sm:$0xf]
  %v18 = vld [vmem:[%s0 + $0xc] sm:$0xf]
  %v19 = vld [vmem:[%s0 + $0x10] sm:$0x1]
  %v20 = vld [vmem:[%s1] sm:$0xf]
  %v21 = vld [vmem:[%s1 + $0x4] sm:$0xf]
  %v22 = vld [vmem:[%s1 + $0x8] sm:$0xf]
  %v23 = vld [vmem:[%s1 + $0xc] sm:$0xf]
  %v24 = vld [vmem:[%s1 + $0x10] sm:$0xf]
  %v25 = vld [vmem:[%s1 + $0x14] sm:$0xf]
  %v26 = vld [vmem:[%s1 + $0x18] sm:$0xf]
  %v27 = vld [vmem:[%s1 + $0x1c] sm:$0xf]
  %v28 = vld [vmem:[%s1 + $0x20] sm:$0xf]
  %v29 = vld [vmem:[%s1 + $0x24] sm:$0xf]
  %v30 = vld [vmem:[%s1 + $0x28] sm:$0xf]
  %v31 = vld [vmem:[%s1 + $0x2c] sm:$0xf]
  %v32 = vld [vmem:[%s1 + $0x30] sm:$0xf]
  %v33 = vld [vmem:[%s1 + $0x34] sm:$0xf]
  %v34 = vld [vmem:[%s1 + $0x38] sm:$0xf]
  %v35 = vld [vmem:[%s1 + $0x3c] sm:$0xf]
  %v36 = vld [vmem:[%s2] sm:$0xff]
  %v37 = vld [vmem:[%s2 + $0x8] sm:$0xff]
  %v38 = vld [vmem:[%s2 + $0x10] sm:$0xff]
  %v39 = vld [vmem:[%s2 + $0x18] sm:$0xff]
  %v40 = vld [vmem:[%s2 + $0x20] sm:$0x3]
  %v46 = vunpack.c.l.b16 %v15
  %v47 = vunpack.c.l.b16 %v16
  %v48 = vunpack.c.l.b16 %v17
  %v49 = vunpack.c.l.b16 %v18
  %v50 = vunpack.c.l.b16 %v19
  %v51 = vpack.c.b16 %v47, %v46
  %v52 = vpack.c.b16 %v49, %v48
  %v53 = vpack.c.b16 %v50, %v50
  %v73 = vunpack.c.l.b16 %v20
  %v74 = vunpack.c.l.b16 %v21
  %v75 = vunpack.c.l.b16 %v22
  %v76 = vunpack.c.l.b16 %v23
  %v77 = vunpack.c.l.b16 %v24
  %v78 = vunpack.c.l.b16 %v25
  %v79 = vunpack.c.l.b16 %v26
  %v80 = vunpack.c.l.b16 %v27
  %v81 = vunpack.c.l.b16 %v28
  %v82 = vunpack.c.l.b16 %v29
  %v83 = vunpack.c.l.b16 %v30
  %v84 = vunpack.c.l.b16 %v31
  %v85 = vunpack.c.l.b16 %v32
  %v86 = vunpack.c.l.b16 %v33
  %v87 = vunpack.c.l.b16 %v34
  %v88 = vunpack.c.l.b16 %v35
  %v89 = vpack.c.b16 %v74, %v73
  %v90 = vpack.c.b16 %v76, %v75
  %v91 = vpack.c.b16 %v78, %v77
  %v92 = vpack.c.b16 %v80, %v79
  %v93 = vpack.c.b16 %v82, %v81
  %v94 = vpack.c.b16 %v84, %v83
  %v95 = vpack.c.b16 %v86, %v85
  %v96 = vpack.c.b16 %v88, %v87
  %105 = vmatprep.subr.bf16.mxu0 0
  %106 = vmatpush1.bf16.msra.mxu0 %v89
  %107 = vmatprep.subr.bf16.mxu0 0
  %108 = vmatpush1.bf16.msra.mxu0 %v90
  %109 = vmatprep.subr.bf16.mxu0 0
  %110 = vmatpush1.bf16.msra.mxu0 %v91
  %111 = vmatprep.subr.bf16.mxu0 0
  %112 = vmatpush1.bf16.msra.mxu0 %v92
  %113 = vmatprep.subr.bf16.mxu0 0
  %114 = vmatpush1.bf16.msra.mxu0 %v93
  %115 = vmatprep.subr.bf16.mxu0 0
  %116 = vmatpush1.bf16.msra.mxu0 %v94
  %117 = vmatprep.subr.bf16.mxu0 0
  %118 = vmatpush1.bf16.msra.mxu0 %v95
  %119 = vmatprep.subr.bf16.mxu0 0
  %120 = vmatpush1.bf16.msra.mxu0 %v96
  %121 = vmatprep.subr.bf16.mxu0 0
  %122 = vmatpush1.bf16.msra.mxu0 0
  %123 = vmatprep.subr.bf16.mxu0 0
  %124 = vmatpush1.bf16.msra.mxu0 0
  %125 = vmatprep.subr.bf16.mxu0 0
  %126 = vmatpush1.bf16.msra.mxu0 0
  %127 = vmatprep.subr.bf16.mxu0 0
  %128 = vmatpush1.bf16.msra.mxu0 0
  %129 = vmatprep.subr.bf16.mxu0 0
  %130 = vmatpush1.bf16.msra.mxu0 0
  %131 = vmatprep.subr.bf16.mxu0 0
  %132 = vmatpush1.bf16.msra.mxu0 0
  %133 = vmatprep.subr.bf16.mxu0 0
  %134 = vmatpush1.bf16.msra.mxu0 0
  %135 = vmatprep.subr.bf16.mxu0 0
  %136 = vmatpush1.bf16.msra.mxu0 0
  %137 = vmatprep.mubr.bf16.mxu0 0
  %138 = vmatmul.mubr.bf16.gmra.mrb[0].mxu0 %v51
  %v139 = vpop.f32.mrb[0].mxu0
  %v140 = vadd.f32 %v36, %v139
  %v141 = vpop.f32.mrb[0].mxu0
  %v142 = vpop.f32.mrb[0].mxu0
  %v143 = vadd.f32 %v37, %v142
  %v144 = vpop.f32.mrb[0].mxu0
  %145 = vmatprep.mubr.bf16.mxu0 0
  %146 = vmatmul.mubr.bf16.gmra.mrb[0].mxu0 %v52
  %v147 = vpop.f32.mrb[0].mxu0
  %v148 = vadd.f32 %v38, %v147
  %v149 = vpop.f32.mrb[0].mxu0
  %v150 = vpop.f32.mrb[0].mxu0
  %v151 = vadd.f32 %v39, %v150
  %v152 = vpop.f32.mrb[0].mxu0
  %153 = vmatprep.mubr.bf16.mxu0 0
  %154 = vmatmul.mubr.bf16.gmra.mrb[0].mxu0 %v53
  %v155 = vpop.f32.mrb[0].mxu0
  %v156 = vadd.f32 %v40, %v155
  %v157 = vpop.f32.mrb[0].mxu0
  %v158 = vpop.f32.mrb[0].mxu0
  %v159 = vpop.f32.mrb[0].mxu0
  %160 = vdwg.mxu0
  %vm161 = vcmask 261120
  %162 = vst.msk [vmem:[%s3] sm:$0xff] %vm161, %v140
  %163 = vst.msk [vmem:[%s3 + $0x8] sm:$0xff] %vm161, %v143
  %164 = vst.msk [vmem:[%s3 + $0x10] sm:$0xff] %vm161, %v148
  %165 = vst.msk [vmem:[%s3 + $0x18] sm:$0xff] %vm161, %v151
  %vm166 = vcmask 254976
  %167 = vst.msk [vmem:[%s3 + $0x20] sm:$0x3] %vm166, %v156
  // Predicated region
  $region14: #{tpu_custom_call.1} parent=0 // pred_check
    _
  $region15: #{tpu_custom_call.1} parent=0 // pred_check_branch
    %169 = sbr.rel (0) target = $region17
  $region16: #{tpu_custom_call.1} parent=0 // pred_region
    _
  $region17: #{tpu_custom_call.1} parent=0 // pred_fallthru
    _
  // Predicated region
  $region18: #{tpu_custom_call.1} parent=0 // pred_check
    _
  $region19: #{tpu_custom_call.1} parent=0 // pred_check_branch
    %171 = sbr.rel (0) target = $region21
  $region20: #{tpu_custom_call.1} parent=0 // pred_region
    _
  $region21: #{tpu_custom_call.1} parent=0 // pred_fallthru
    _

</llo_original>
